<compile_context>
chip_gen: v5e
topology: v5e:2x2
jax: 0.10.0
libtpu: 0.0.40
codegen_flags: <defaults>
</compile_context>

<pallas_src>
import jax
import jax.numpy as jnp
from jax.experimental import pallas as pl
from jax.experimental.pallas import tpu as pltpu


def _pick_batch_block(n):
    """Fat grid steps amortize per-step overhead, but keep >=2 parallel steps
    (when possible) so both v7x TensorCores get work; on 1-TC chips the extra
    step costs ~0.35us total, which is negligible."""
    if n <= 1:
        return 1
    nb = n // 2
    while n % nb:
        nb -= 1
    return nb


def conv2d_relu_pallas(x_nchw, w_oihw, bias):
    """3x3 / stride 1 / pad 1 conv + ReLU.  x: [N,C,H,W], w: [K,C,3,3], bias: [K]."""
    N, C, H, W = x_nchw.shape
    K, Cw, KH, KW = w_oihw.shape
    assert C == Cw and KH == 3 and KW == 3
    HW = H * W
    assert HW % 128 == 0, "H*W must be a multiple of 128 for the lane-dense layout"

    CP = ((C + 7) // 8) * 8            # pad contraction to the f32 sublane tile only
    NB = _pick_batch_block(N)          # images per grid step
    G = N // NB

    # ---- free / tiny host-side layout prep (no im2col, no patch expansion) ----
    x_flat = x_nchw.reshape(N, C, HW)                      # free reshape (NCHW order)
    if CP != C:
        x_flat = jnp.pad(x_flat, ((0, 0), (0, CP - C), (0, 0)))   # zero channel pad

    # tap t = di*3 + dj  ->  weight slab w[:, :, di, dj] of shape (K, CP)
    w_taps = jnp.transpose(w_oihw, (2, 3, 0, 1)).reshape(KH * KW, K, C)
    if CP != C:
        w_taps = jnp.pad(w_taps, ((0, 0), (0, 0), (0, CP - C)))
    bias2d = bias.reshape(K, 1)

    # resident boundary-mask table: mask[t, h*W+w] = 1 iff the 3x3 tap (di,dj)
    # stays inside the image at output position (h, w)  (== SAME zero padding)
    hh = jnp.arange(HW, dtype=jnp.int32) // W
    ww = jnp.arange(HW, dtype=jnp.int32) % W
    rows = []
    for di in range(KH):
        for dj in range(KW):
            oi, oj = di - 1, dj - 1
            valid = ((hh + oi >= 0) & (hh + oi < H) &
                     (ww + oj >= 0) & (ww + oj < W))
            rows.append(valid.astype(jnp.float32))
    mask_tbl = jnp.stack(rows, axis=0)                      # (9, HW), ~9 KiB resident

    def kernel(x_ref, w_ref, b_ref, m_ref, o_ref):
        # x_ref : (NB, CP, HW)  NB images, H*W flattened onto lanes
        # w_ref : (9, K, CP)    resident per-tap weight slabs
        # b_ref : (K, 1)        resident bias
        # m_ref : (9, HW)       resident boundary masks (SAME zero padding)
        # o_ref : (NB, K, HW)   lane-dense output block (HW >= 128 -> unmasked stores)
        w_tap = [w_ref[t] for t in range(KH * KW)]          # each (K, CP)
        m_tap = [m_ref[pl.ds(t, 1), :] for t in range(KH * KW)]   # each (1, HW)
        b = b_ref[...]                                      # (K, 1) lane broadcast

        for i in range(NB):
            x = x_ref[i]                                    # (CP, HW)
            acc = None
            # Fused im2col-free conv: for tap (di,dj) the flattened image rolled by
            # s = (di-1)*W + (dj-1) equals the shifted activation wherever the 3x3
            # window stays inside the image; out-of-image lanes are zeroed by the
            # resident mask.  pltpu.roll is an XLU lane rotation (free slot), and
            # each tap contributes one tiny MXU dot accumulated in registers.
            for di in range(KH):
                for dj in range(KW):
                    t = di * KW + dj
                    s = (di - 1) * W + (dj - 1)
                    shifted = x if s == 0 else pltpu.roll(x, (-s) % HW, axis=1)
                    part = jnp.dot(w_tap[t], shifted * m_tap[t],
                                   preferred_element_type=jnp.float32)
                    acc = part if acc is None else acc + part
            o_ref[i] = jnp.maximum(acc + b, 0.0).astype(o_ref.dtype)

    grid_spec = pltpu.PrefetchScalarGridSpec(
        num_scalar_prefetch=0,
        grid=(G,),                                          # NB images per grid step
        in_specs=[
            pl.BlockSpec((NB, CP, HW), lambda g: (g, 0, 0)),    # pipelined x block
            pl.BlockSpec((KH * KW, K, CP), lambda g: (0, 0, 0)),  # resident weights
            pl.BlockSpec((K, 1), lambda g: (0, 0)),               # resident bias
            pl.BlockSpec((KH * KW, HW), lambda g: (0, 0)),        # resident masks
        ],
        out_specs=pl.BlockSpec((NB, K, HW), lambda g: (g, 0, 0)),
    )

    out_flat = pl.pallas_call(
        kernel,
        out_shape=jax.ShapeDtypeStruct((N, K, HW), jnp.float32),
        grid_spec=grid_spec,
        compiler_params=pltpu.CompilerParams(
            # batch axis is independent -> megacore sharding on v7x's 2 TCs
            dimension_semantics=("parallel",),
            # explicit, v7x-safe budget (64 MiB phys / 32 MiB scoped); this kernel
            # actually needs well under 1 MiB per step
            vmem_limit_bytes=32 * 1024 * 1024,
        ),
    )(x_flat, w_taps, bias2d, mask_tbl)

    # free reshape back to NCHW -- no transpose, no slice
    return out_flat.reshape(N, K, H, W)


@jax.jit
def torch_compile_forward(x_nchw, params):
    """Pallas equivalent of TorchCompile.forward: run the compiled wrapped model."""
    w, b = params
    return conv2d_relu_pallas(x_nchw, w, b)


if __name__ == "__main__":
    key = jax.random.PRNGKey(0)
    kx, kw, kb = jax.random.split(key, 3)

    N, C, H, W, K = 2, 4, 16, 16, 8
    x = jax.random.normal(kx, (N, C, H, W), dtype=jnp.float32)
    # deterministic synthetic params for the wrapped Conv2d(4, 8, 3, padding=1)
    w = jax.random.normal(kw, (K, C, 3, 3), dtype=jnp.float32) * 0.1
    b = jax.random.normal(kb, (K,), dtype=jnp.float32) * 0.1

    out = torch_compile_forward(x, (w, b))
    out = jax.block_until_ready(out)

    # reference check against XLA conv (NCHW, OIHW); f32 operands on the MXU keep
    # the kernel close to the f32 reference
    ref = jax.lax.conv_general_dilated(
        x, w, window_strides=(1, 1), padding="SAME",
        dimension_numbers=("NCHW", "OIHW", "NCHW"))
    ref = jnp.maximum(ref + b.reshape(1, K, 1, 1), 0.0)
    assert out.shape == (N, K, H, W)
    assert jnp.allclose(out, ref, atol=2e-2, rtol=2e-2), \
        float(jnp.max(jnp.abs(out - ref)))

    print("KERNEL_OK")
</pallas_src>

<mosaic_0001>
module attributes {stable_mosaic.version = 11 : i64} {
  func.func @kernel(%arg0: i32, %arg1: memref<1x8x256xf32, #tpu.memory_space<vmem>>, %arg2: memref<9x8x8xf32, #tpu.memory_space<vmem>>, %arg3: memref<8x1xf32, #tpu.memory_space<vmem>>, %arg4: memref<9x256xf32, #tpu.memory_space<vmem>>, %arg5: memref<1x8x256xf32, #tpu.memory_space<vmem>>) attributes {dimension_semantics = [#tpu.dimension_semantics<parallel>], iteration_bounds = array<i64: 2>, scalar_prefetch = 0 : i64, scratch_operands = 0 : i64, tpu.core_type = #tpu.core_type<tc>, window_params = [{transform_indices = @transform_0, window_bounds = array<i64: 1, 8, 256>}, {pipeline_mode = #tpu.pipeline_mode<synchronous>, transform_indices = @transform_1, window_bounds = array<i64: 9, 8, 8>}, {pipeline_mode = #tpu.pipeline_mode<synchronous>, transform_indices = @transform_2, window_bounds = array<i64: 8, 1>}, {pipeline_mode = #tpu.pipeline_mode<synchronous>, transform_indices = @transform_3, window_bounds = array<i64: 9, 256>}, {transform_indices = @transform_4, window_bounds = array<i64: 1, 8, 256>}]} {
    %c0 = arith.constant 0 : index
    %c0_0 = arith.constant 0 : index
    %c0_1 = arith.constant 0 : index
    %0 = vector.load %arg2[%c0, %c0_0, %c0_1] : memref<9x8x8xf32, #tpu.memory_space<vmem>>, vector<1x8x8xf32>
    %1 = vector.shape_cast %0 : vector<1x8x8xf32> to vector<8x8xf32>
    %c1 = arith.constant 1 : index
    %c0_2 = arith.constant 0 : index
    %c0_3 = arith.constant 0 : index
    %2 = vector.load %arg2[%c1, %c0_2, %c0_3] : memref<9x8x8xf32, #tpu.memory_space<vmem>>, vector<1x8x8xf32>
    %3 = vector.shape_cast %2 : vector<1x8x8xf32> to vector<8x8xf32>
    %c2 = arith.constant 2 : index
    %c0_4 = arith.constant 0 : index
    %c0_5 = arith.constant 0 : index
    %4 = vector.load %arg2[%c2, %c0_4, %c0_5] : memref<9x8x8xf32, #tpu.memory_space<vmem>>, vector<1x8x8xf32>
    %5 = vector.shape_cast %4 : vector<1x8x8xf32> to vector<8x8xf32>
    %c3 = arith.constant 3 : index
    %c0_6 = arith.constant 0 : index
    %c0_7 = arith.constant 0 : index
    %6 = vector.load %arg2[%c3, %c0_6, %c0_7] : memref<9x8x8xf32, #tpu.memory_space<vmem>>, vector<1x8x8xf32>
    %7 = vector.shape_cast %6 : vector<1x8x8xf32> to vector<8x8xf32>
    %c4 = arith.constant 4 : index
    %c0_8 = arith.constant 0 : index
    %c0_9 = arith.constant 0 : index
    %8 = vector.load %arg2[%c4, %c0_8, %c0_9] : memref<9x8x8xf32, #tpu.memory_space<vmem>>, vector<1x8x8xf32>
    %9 = vector.shape_cast %8 : vector<1x8x8xf32> to vector<8x8xf32>
    %c5 = arith.constant 5 : index
    %c0_10 = arith.constant 0 : index
    %c0_11 = arith.constant 0 : index
    %10 = vector.load %arg2[%c5, %c0_10, %c0_11] : memref<9x8x8xf32, #tpu.memory_space<vmem>>, vector<1x8x8xf32>
    %11 = vector.shape_cast %10 : vector<1x8x8xf32> to vector<8x8xf32>
    %c6 = arith.constant 6 : index
    %c0_12 = arith.constant 0 : index
    %c0_13 = arith.constant 0 : index
    %12 = vector.load %arg2[%c6, %c0_12, %c0_13] : memref<9x8x8xf32, #tpu.memory_space<vmem>>, vector<1x8x8xf32>
    %13 = vector.shape_cast %12 : vector<1x8x8xf32> to vector<8x8xf32>
    %c7 = arith.constant 7 : index
    %c0_14 = arith.constant 0 : index
    %c0_15 = arith.constant 0 : index
    %14 = vector.load %arg2[%c7, %c0_14, %c0_15] : memref<9x8x8xf32, #tpu.memory_space<vmem>>, vector<1x8x8xf32>
    %15 = vector.shape_cast %14 : vector<1x8x8xf32> to vector<8x8xf32>
    %c8 = arith.constant 8 : index
    %c0_16 = arith.constant 0 : index
    %c0_17 = arith.constant 0 : index
    %16 = vector.load %arg2[%c8, %c0_16, %c0_17] : memref<9x8x8xf32, #tpu.memory_space<vmem>>, vector<1x8x8xf32>
    %17 = vector.shape_cast %16 : vector<1x8x8xf32> to vector<8x8xf32>
    %c0_18 = arith.constant 0 : index
    %c0_19 = arith.constant 0 : index
    %18 = vector.load %arg4[%c0_18, %c0_19] : memref<9x256xf32, #tpu.memory_space<vmem>>, vector<1x256xf32>
    %c1_20 = arith.constant 1 : index
    %c0_21 = arith.constant 0 : index
    %19 = vector.load %arg4[%c1_20, %c0_21] : memref<9x256xf32, #tpu.memory_space<vmem>>, vector<1x256xf32>
    %c2_22 = arith.constant 2 : index
    %c0_23 = arith.constant 0 : index
    %20 = vector.load %arg4[%c2_22, %c0_23] : memref<9x256xf32, #tpu.memory_space<vmem>>, vector<1x256xf32>
    %c3_24 = arith.constant 3 : index
    %c0_25 = arith.constant 0 : index
    %21 = vector.load %arg4[%c3_24, %c0_25] : memref<9x256xf32, #tpu.memory_space<vmem>>, vector<1x256xf32>
    %c4_26 = arith.constant 4 : index
    %c0_27 = arith.constant 0 : index
    %22 = vector.load %arg4[%c4_26, %c0_27] : memref<9x256xf32, #tpu.memory_space<vmem>>, vector<1x256xf32>
    %c5_28 = arith.constant 5 : index
    %c0_29 = arith.constant 0 : index
    %23 = vector.load %arg4[%c5_28, %c0_29] : memref<9x256xf32, #tpu.memory_space<vmem>>, vector<1x256xf32>
    %c6_30 = arith.constant 6 : index
    %c0_31 = arith.constant 0 : index
    %24 = vector.load %arg4[%c6_30, %c0_31] : memref<9x256xf32, #tpu.memory_space<vmem>>, vector<1x256xf32>
    %c7_32 = arith.constant 7 : index
    %c0_33 = arith.constant 0 : index
    %25 = vector.load %arg4[%c7_32, %c0_33] : memref<9x256xf32, #tpu.memory_space<vmem>>, vector<1x256xf32>
    %c8_34 = arith.constant 8 : index
    %c0_35 = arith.constant 0 : index
    %26 = vector.load %arg4[%c8_34, %c0_35] : memref<9x256xf32, #tpu.memory_space<vmem>>, vector<1x256xf32>
    %c0_36 = arith.constant 0 : index
    %c0_37 = arith.constant 0 : index
    %27 = vector.load %arg3[%c0_36, %c0_37] : memref<8x1xf32, #tpu.memory_space<vmem>>, vector<8x1xf32>
    %c0_38 = arith.constant 0 : index
    %c0_39 = arith.constant 0 : index
    %c0_40 = arith.constant 0 : index
    %28 = vector.load %arg1[%c0_38, %c0_39, %c0_40] : memref<1x8x256xf32, #tpu.memory_space<vmem>>, vector<1x8x256xf32>
    %29 = vector.shape_cast %28 : vector<1x8x256xf32> to vector<8x256xf32>
    %c17_i32 = arith.constant 17 : i32
    %30 = tpu.dynamic_rotate %29 by %c17_i32 dim 1 : vector<8x256xf32>, i32 -> vector<8x256xf32>
    %31 = vector.broadcast %18 : vector<1x256xf32> to vector<8x256xf32>
    %32 = arith.mulf %30, %31 : vector<8x256xf32>
    %cst = arith.constant dense<0.000000e+00> : vector<8x256xf32>
    %33 = tpu.matmul %1, %32, %cst {dimension_numbers = #tpu.dot_dimension_numbers<[1], [0], [0], [1], [0, 0, 1, 1], [], []>} : vector<8x8xf32>, vector<8x256xf32>, vector<8x256xf32> -> vector<8x256xf32>
    %c16_i32 = arith.constant 16 : i32
    %34 = tpu.dynamic_rotate %29 by %c16_i32 dim 1 : vector<8x256xf32>, i32 -> vector<8x256xf32>
    %35 = vector.broadcast %19 : vector<1x256xf32> to vector<8x256xf32>
    %36 = arith.mulf %34, %35 : vector<8x256xf32>
    %cst_41 = arith.constant dense<0.000000e+00> : vector<8x256xf32>
    %37 = tpu.matmul %3, %36, %cst_41 {dimension_numbers = #tpu.dot_dimension_numbers<[1], [0], [0], [1], [0, 0, 1, 1], [], []>} : vector<8x8xf32>, vector<8x256xf32>, vector<8x256xf32> -> vector<8x256xf32>
    %38 = arith.addf %33, %37 : vector<8x256xf32>
    %c15_i32 = arith.constant 15 : i32
    %39 = tpu.dynamic_rotate %29 by %c15_i32 dim 1 : vector<8x256xf32>, i32 -> vector<8x256xf32>
    %40 = vector.broadcast %20 : vector<1x256xf32> to vector<8x256xf32>
    %41 = arith.mulf %39, %40 : vector<8x256xf32>
    %cst_42 = arith.constant dense<0.000000e+00> : vector<8x256xf32>
    %42 = tpu.matmul %5, %41, %cst_42 {dimension_numbers = #tpu.dot_dimension_numbers<[1], [0], [0], [1], [0, 0, 1, 1], [], []>} : vector<8x8xf32>, vector<8x256xf32>, vector<8x256xf32> -> vector<8x256xf32>
    %43 = arith.addf %38, %42 : vector<8x256xf32>
    %c1_i32 = arith.constant 1 : i32
    %44 = tpu.dynamic_rotate %29 by %c1_i32 dim 1 : vector<8x256xf32>, i32 -> vector<8x256xf32>
    %45 = vector.broadcast %21 : vector<1x256xf32> to vector<8x256xf32>
    %46 = arith.mulf %44, %45 : vector<8x256xf32>
    %cst_43 = arith.constant dense<0.000000e+00> : vector<8x256xf32>
    %47 = tpu.matmul %7, %46, %cst_43 {dimension_numbers = #tpu.dot_dimension_numbers<[1], [0], [0], [1], [0, 0, 1, 1], [], []>} : vector<8x8xf32>, vector<8x256xf32>, vector<8x256xf32> -> vector<8x256xf32>
    %48 = arith.addf %43, %47 : vector<8x256xf32>
    %49 = vector.broadcast %22 : vector<1x256xf32> to vector<8x256xf32>
    %50 = arith.mulf %29, %49 : vector<8x256xf32>
    %cst_44 = arith.constant dense<0.000000e+00> : vector<8x256xf32>
    %51 = tpu.matmul %9, %50, %cst_44 {dimension_numbers = #tpu.dot_dimension_numbers<[1], [0], [0], [1], [0, 0, 1, 1], [], []>} : vector<8x8xf32>, vector<8x256xf32>, vector<8x256xf32> -> vector<8x256xf32>
    %52 = arith.addf %48, %51 : vector<8x256xf32>
    %c255_i32 = arith.constant 255 : i32
    %53 = tpu.dynamic_rotate %29 by %c255_i32 dim 1 : vector<8x256xf32>, i32 -> vector<8x256xf32>
    %54 = vector.broadcast %23 : vector<1x256xf32> to vector<8x256xf32>
    %55 = arith.mulf %53, %54 : vector<8x256xf32>
    %cst_45 = arith.constant dense<0.000000e+00> : vector<8x256xf32>
    %56 = tpu.matmul %11, %55, %cst_45 {dimension_numbers = #tpu.dot_dimension_numbers<[1], [0], [0], [1], [0, 0, 1, 1], [], []>} : vector<8x8xf32>, vector<8x256xf32>, vector<8x256xf32> -> vector<8x256xf32>
    %57 = arith.addf %52, %56 : vector<8x256xf32>
    %c241_i32 = arith.constant 241 : i32
    %58 = tpu.dynamic_rotate %29 by %c241_i32 dim 1 : vector<8x256xf32>, i32 -> vector<8x256xf32>
    %59 = vector.broadcast %24 : vector<1x256xf32> to vector<8x256xf32>
    %60 = arith.mulf %58, %59 : vector<8x256xf32>
    %cst_46 = arith.constant dense<0.000000e+00> : vector<8x256xf32>
    %61 = tpu.matmul %13, %60, %cst_46 {dimension_numbers = #tpu.dot_dimension_numbers<[1], [0], [0], [1], [0, 0, 1, 1], [], []>} : vector<8x8xf32>, vector<8x256xf32>, vector<8x256xf32> -> vector<8x256xf32>
    %62 = arith.addf %57, %61 : vector<8x256xf32>
    %c240_i32 = arith.constant 240 : i32
    %63 = tpu.dynamic_rotate %29 by %c240_i32 dim 1 : vector<8x256xf32>, i32 -> vector<8x256xf32>
    %64 = vector.broadcast %25 : vector<1x256xf32> to vector<8x256xf32>
    %65 = arith.mulf %63, %64 : vector<8x256xf32>
    %cst_47 = arith.constant dense<0.000000e+00> : vector<8x256xf32>
    %66 = tpu.matmul %15, %65, %cst_47 {dimension_numbers = #tpu.dot_dimension_numbers<[1], [0], [0], [1], [0, 0, 1, 1], [], []>} : vector<8x8xf32>, vector<8x256xf32>, vector<8x256xf32> -> vector<8x256xf32>
    %67 = arith.addf %62, %66 : vector<8x256xf32>
    %c239_i32 = arith.constant 239 : i32
    %68 = tpu.dynamic_rotate %29 by %c239_i32 dim 1 : vector<8x256xf32>, i32 -> vector<8x256xf32>
    %69 = vector.broadcast %26 : vector<1x256xf32> to vector<8x256xf32>
    %70 = arith.mulf %68, %69 : vector<8x256xf32>
    %cst_48 = arith.constant dense<0.000000e+00> : vector<8x256xf32>
    %71 = tpu.matmul %17, %70, %cst_48 {dimension_numbers = #tpu.dot_dimension_numbers<[1], [0], [0], [1], [0, 0, 1, 1], [], []>} : vector<8x8xf32>, vector<8x256xf32>, vector<8x256xf32> -> vector<8x256xf32>
    %72 = arith.addf %67, %71 : vector<8x256xf32>
    %73 = vector.broadcast %27 : vector<8x1xf32> to vector<8x256xf32>
    %74 = arith.addf %72, %73 : vector<8x256xf32>
    %cst_49 = arith.constant 0.000000e+00 : f32
    %75 = vector.broadcast %cst_49 : f32 to vector<8x256xf32>
    %76 = arith.maximumf %74, %75 : vector<8x256xf32>
    %c0_50 = arith.constant 0 : index
    %c0_51 = arith.constant 0 : index
    %c0_52 = arith.constant 0 : index
    %77 = vector.load %arg5[%c0_50, %c0_51, %c0_52] : memref<1x8x256xf32, #tpu.memory_space<vmem>>, vector<1x8x256xf32>
    %78 = vector.shape_cast %77 : vector<1x8x256xf32> to vector<8x256xf32>
    %79 = vector.shape_cast %76 : vector<8x256xf32> to vector<1x8x256xf32>
    tpu.vector_store %arg5[%c0_50, %c0_51, %c0_52], %79 {strides = array<i32>} : memref<1x8x256xf32, #tpu.memory_space<vmem>>, vector<1x8x256xf32>,
    return
  }
  func.func @transform_0(%arg0: i32) -> (i32, i32, i32) {
    %c0_i32 = arith.constant 0 : i32
    %c0_i32_0 = arith.constant 0 : i32
    %c0_i32_1 = arith.constant 0 : i32
    return %arg0, %c0_i32, %c0_i32_0 : i32, i32, i32
  }
  func.func @transform_1(%arg0: i32) -> (i32, i32, i32) {
    %c0_i32 = arith.constant 0 : i32
    %c0_i32_0 = arith.constant 0 : i32
    %c0_i32_1 = arith.constant 0 : i32
    %c0_i32_2 = arith.constant 0 : i32
    return %c0_i32, %c0_i32_0, %c0_i32_1 : i32, i32, i32
  }
  func.func @transform_2(%arg0: i32) -> (i32, i32) {
    %c0_i32 = arith.constant 0 : i32
    %c0_i32_0 = arith.constant 0 : i32
    %c0_i32_1 = arith.constant 0 : i32
    return %c0_i32, %c0_i32_0 : i32, i32
  }
  func.func @transform_3(%arg0: i32) -> (i32, i32) {
    %c0_i32 = arith.constant 0 : i32
    %c0_i32_0 = arith.constant 0 : i32
    %c0_i32_1 = arith.constant 0 : i32
    return %c0_i32, %c0_i32_0 : i32, i32
  }
  func.func @transform_4(%arg0: i32) -> (i32, i32, i32) {
    %c0_i32 = arith.constant 0 : i32
    %c0_i32_0 = arith.constant 0 : i32
    %c0_i32_1 = arith.constant 0 : i32
    return %arg0, %c0_i32, %c0_i32_0 : i32, i32, i32
  }
}

</mosaic_0001>

<llo_original>
// kernel: torch_compile_forward.1
$region0: #{torch_compile_forward.1}
  #allocation0 [shape = 'u32[]', space=smem, size = 0x4, offset = 0x4, fixed_abs, tag = 'smem constant byte address 0x4 - core index']
  #allocation1 [shape = 'u32[72,128]{1,0:T(1,128)}', space=vmem, size = 0x9000, scoped, tag = 'internal scratch']
  %s0 = inlined_call_operand.vmem [shape: f32[2,8,256], index: 0, kind: input, shape index: {}]
  %s1 = inlined_call_operand.vmem [shape: f32[9,8,8], index: 1, kind: input, shape index: {}]
  %s2 = inlined_call_operand.vmem [shape: f32[8,1], index: 2, kind: input, shape index: {}]
  %s3 = inlined_call_operand.vmem [shape: f32[9,256], index: 3, kind: input, shape index: {}]
  %s4 = inlined_call_operand.vmem [shape: f32[2,8,256], index: 4, kind: output, shape index: {}]
  %s5 = sld [smem:[#allocation0]]
  $region49: #{torch_compile_forward.1} parent=0
    _
  %s7 = ssub.s32 1, %s5
  %s8 = scalar_select 0, %s7, %s5
  loop: start=0, step=1, limit=4
  $region2: #{torch_compile_forward.1} parent=0 // loop_pre_header
    _
  $region3: #{torch_compile_forward.1} parent=0 // loop_header
    %s10 = sphi 0, %s14
    %p11 = scmp.ge.s32.totalorder %s10, 4
    %s20 = sphi 0, %s22
    %s23 = sphi 0, %s20
    %s24 = sphi 0, %s23
    %s40 = sphi 0, %s24
    %s44 = sphi 0, %s44
    %s46 = sphi 0, %s44
    %s47 = sphi 0, %s46
    %s61 = sphi 0, %s47
    %s65 = sphi 0, %s65
    %s67 = sphi 0, %s65
    %s68 = sphi 0, %s67
    %s82 = sphi 0, %s68
    %s86 = sphi 0, %s86
    %s88 = sphi 0, %s86
    %s89 = sphi 0, %s88
    %s103 = sphi 0, %s89
    %s109 = sphi 0, %s111
    %s112 = sphi 0, %s109
    %s113 = sphi 0, %s112
    %s129 = sphi 0, %s113
  $region4: #{torch_compile_forward.1} parent=0 // loop_header_branch
    %13 = sbr.rel (%p11) target = $region8
  $region5: #{torch_compile_forward.1} parent=0 // loop_body
    %s15 = ssub.s32 %s10, 1
    %s16 = ssub.s32 %s10, 2
    %s17 = sadd.s32 %s10, 1
    %s18 = ssub.s32 %s10, %s17
    %p19 = scmp.eq.s32.totalorder %s18, 0
    %s21 = sadd.s32 %s20, 1
    %s22 = scalar_select %p19, %s20, %s21
    %p25 = pneg %p19
    %p26 = scmp.eq.s32.totalorder %s10, 1
    %p27 = por %p25, %p26
    %p28 = scmp.ne.s32.totalorder %s20, %s23
    %p29 = scmp.eq.s32.totalorder %s10, 0
    %p30 = por %p28, %p29
    %p31 = scmp.ne.s32.totalorder %s20, %s23
    %p32 = scmp.eq.s32.totalorder %s15, 1
    %p33 = por %p31, %p32
    %p34 = scmp.ne.s32.totalorder %s23, %s24
    %p35 = scmp.eq.s32.totalorder %s15, 0
    %p36 = por %p34, %p35
    %p37 = scmp.ne.s32.totalorder %s23, %s24
    %p38 = scmp.eq.s32.totalorder %s16, 1
    %p39 = por %p37, %p38
    %p41 = scmp.ne.s32.totalorder %s24, %s40
    %p42 = scmp.eq.s32.totalorder %s16, 0
    %p43 = por %p41, %p42
    %s45 = sadd.s32 %s44, 1
    %p48 = scmp.eq.s32.totalorder %s10, 1
    %p49 = scmp.ne.s32.totalorder %s44, %s46
    %p50 = scmp.eq.s32.totalorder %s10, 0
    %p51 = por %p49, %p50
    %p52 = scmp.ne.s32.totalorder %s44, %s46
    %p53 = scmp.eq.s32.totalorder %s15, 1
    %p54 = por %p52, %p53
    %p55 = scmp.ne.s32.totalorder %s46, %s47
    %p56 = scmp.eq.s32.totalorder %s15, 0
    %p57 = por %p55, %p56
    %p58 = scmp.ne.s32.totalorder %s46, %s47
    %p59 = scmp.eq.s32.totalorder %s16, 1
    %p60 = por %p58, %p59
    %p62 = scmp.ne.s32.totalorder %s47, %s61
    %p63 = scmp.eq.s32.totalorder %s16, 0
    %p64 = por %p62, %p63
    %s66 = sadd.s32 %s65, 1
    %p69 = scmp.eq.s32.totalorder %s10, 1
    %p70 = scmp.ne.s32.totalorder %s65, %s67
    %p71 = scmp.eq.s32.totalorder %s10, 0
    %p72 = por %p70, %p71
    %p73 = scmp.ne.s32.totalorder %s65, %s67
    %p74 = scmp.eq.s32.totalorder %s15, 1
    %p75 = por %p73, %p74
    %p76 = scmp.ne.s32.totalorder %s67, %s68
    %p77 = scmp.eq.s32.totalorder %s15, 0
    %p78 = por %p76, %p77
    %p79 = scmp.ne.s32.totalorder %s67, %s68
    %p80 = scmp.eq.s32.totalorder %s16, 1
    %p81 = por %p79, %p80
    %p83 = scmp.ne.s32.totalorder %s68, %s82
    %p84 = scmp.eq.s32.totalorder %s16, 0
    %p85 = por %p83, %p84
    %s87 = sadd.s32 %s86, 1
    %p90 = scmp.eq.s32.totalorder %s10, 1
    %p91 = scmp.ne.s32.totalorder %s86, %s88
    %p92 = scmp.eq.s32.totalorder %s10, 0
    %p93 = por %p91, %p92
    %p94 = scmp.ne.s32.totalorder %s86, %s88
    %p95 = scmp.eq.s32.totalorder %s15, 1
    %p96 = por %p94, %p95
    %p97 = scmp.ne.s32.totalorder %s88, %s89
    %p98 = scmp.eq.s32.totalorder %s15, 0
    %p99 = por %p97, %p98
    %p100 = scmp.ne.s32.totalorder %s88, %s89
    %p101 = scmp.eq.s32.totalorder %s16, 1
    %p102 = por %p100, %p101
    %p104 = scmp.ne.s32.totalorder %s89, %s103
    %p105 = scmp.eq.s32.totalorder %s16, 0
    %p106 = por %p104, %p105
    %s107 = ssub.s32 %s10, %s17
    %p108 = scmp.eq.s32.totalorder %s107, 0
    %s110 = sadd.s32 %s109, 1
    %s111 = scalar_select %p108, %s109, %s110
    %p114 = pneg %p108
    %p115 = scmp.eq.s32.totalorder %s10, 1
    %p116 = por %p114, %p115
    %p117 = scmp.ne.s32.totalorder %s109, %s112
    %p118 = scmp.eq.s32.totalorder %s10, 0
    %p119 = por %p117, %p118
    %p120 = scmp.ne.s32.totalorder %s109, %s112
    %p121 = scmp.eq.s32.totalorder %s15, 1
    %p122 = por %p120, %p121
    %p123 = scmp.ne.s32.totalorder %s112, %s113
    %p124 = scmp.eq.s32.totalorder %s15, 0
    %p125 = por %p123, %p124
    %p126 = scmp.ne.s32.totalorder %s112, %s113
    %p127 = scmp.eq.s32.totalorder %s16, 1
    %p128 = por %p126, %p127
    %p130 = scmp.ne.s32.totalorder %s113, %s129
    %p131 = scmp.eq.s32.totalorder %s16, 0
    %p132 = por %p130, %p131
    %p133 = scmp.le.s32.totalorder 1, %s10
    %p134 = scmp.lt.s32.totalorder %s10, 3
    %p135 = pnand %p133, %p134
    %p136 = pneg %p135
    // Predicated region
    $region9: #{torch_compile_forward.1} parent=5 // pred_check
      _
    $region10: #{torch_compile_forward.1} parent=5 // pred_check_branch
      %138 = sbr.rel (%p135) target = $region12
    $region11: #{torch_compile_forward.1} parent=5 // pred_region
      %s139 = ssub.s32 %s10, 1
      // Predicated region
      $region13: #{torch_compile_forward.1} parent=11 // pred_check
        %p140 = pneg %p57
      $region14: #{torch_compile_forward.1} parent=11 // pred_check_branch
        %142 = sbr.rel (%p140) target = $region16
      $region15: #{torch_compile_forward.1} parent=11 // pred_region
        _
      $region16: #{torch_compile_forward.1} parent=11 // pred_fallthru
        _
      // Predicated region
      $region17: #{torch_compile_forward.1} parent=11 // pred_check
        %p143 = pneg %p78
      $region18: #{torch_compile_forward.1} parent=11 // pred_check_branch
        %145 = sbr.rel (%p143) target = $region20
      $region19: #{torch_compile_forward.1} parent=11 // pred_region
        _
      $region20: #{torch_compile_forward.1} parent=11 // pred_fallthru
        _
      // Predicated region
      $region21: #{torch_compile_forward.1} parent=11 // pred_check
        %p146 = pneg %p99
      $region22: #{torch_compile_forward.1} parent=11 // pred_check_branch
        %148 = sbr.rel (%p146) target = $region24
      $region23: #{torch_compile_forward.1} parent=11 // pred_region
        _
      $region24: #{torch_compile_forward.1} parent=11 // pred_fallthru
        _
    $region12: #{torch_compile_forward.1} parent=5 // pred_fallthru
      _
    %p149 = scmp.lt.s32.totalorder %s10, 2
    // Predicated region
    $region25: #{torch_compile_forward.1} parent=5 // pred_check
      %p150 = pneg %p149
    $region26: #{torch_compile_forward.1} parent=5 // pred_check_branch
      %152 = sbr.rel (%p150) target = $region28
    $region27: #{torch_compile_forward.1} parent=5 // pred_region
      // Predicated region
      $region29: #{torch_compile_forward.1} parent=27 // pred_check
        %p153 = pneg %p30
      $region30: #{torch_compile_forward.1} parent=27 // pred_check_branch
        %155 = sbr.rel (%p153) target = $region32
      $region31: #{torch_compile_forward.1} parent=27 // pred_region
        %p156 = scmp.lt.s32.totalorder %s10, 1
        %s157 = scalar_select %p156, %s10, 1
        %s158 = smul.addr %s157, 2
        %s159 = smul.addr %s158, 8
        %s160 = scalar_lea.vmem %s0, %s159
      $region32: #{torch_compile_forward.1} parent=27 // pred_fallthru
        _
    $region28: #{torch_compile_forward.1} parent=5 // pred_fallthru
      _
    %p161 = scmp.le.s32.totalorder 1, %s10
    %p162 = scmp.lt.s32.totalorder %s10, 3
    %p163 = pnand %p161, %p162
    %p164 = pneg %p163
    // Predicated region
    $region33: #{torch_compile_forward.1} parent=5 // pred_check
      _
    $region34: #{torch_compile_forward.1} parent=5 // pred_check_branch
      %166 = sbr.rel (%p163) target = $region36
    $region35: #{torch_compile_forward.1} parent=5 // pred_region
      %s167 = ssub.s32 %s10, 1
      %p168 = scmp.lt.s32.totalorder %s15, 1
      %s169 = scalar_select %p168, %s15, 1
      %s170 = smul.addr %s169, 2
      %s171 = smul.addr %s170, 8
      %s172 = scalar_lea.vmem %s0, %s171
      %p173 = pneg %p36
      %p174 = pneg %p33
      %p175 = pneg %p57
      %p176 = pneg %p54
      %p177 = pneg %p78
      %p178 = pneg %p75
      %p179 = pneg %p99
      %p180 = pneg %p96
      %p181 = pneg %p125
      %p182 = pneg %p122
      %p183 = scmp.lt.s32.totalorder %s15, 1
      %s184 = scalar_select %p183, %s15, 1
      %s185 = smul.addr %s184, 2
      %s186 = smul.addr %s185, 8
      %s187 = scalar_lea.vmem %s4, %s186
      %p188 = scmp.lt.s32.totalorder %s15, 1
      %s189 = scalar_select %p188, %s15, 1
      %s190 = smul.addr %s189, 2
      %s191 = smul.addr %s190, 8
      %s192 = scalar_lea.vmem %s0, %s191
      %p193 = scmp.lt.s32.totalorder %s15, 1
      %s194 = scalar_select %p193, %s15, 1
      %s195 = smul.addr %s194, 2
      %s196 = smul.addr %s195, 8
      %s197 = scalar_lea.vmem %s4, %s196
      %v198 = vld [vmem:[%s1] sm:$0xff]
      %s199 = scalar_lea.vmem %s1, 8
      %v200 = vld [vmem:[%s199] sm:$0xff]
      %s201 = scalar_lea.vmem %s1, 16
      %v202 = vld [vmem:[%s201] sm:$0xff]
      %s203 = scalar_lea.vmem %s1, 24
      %v204 = vld [vmem:[%s203] sm:$0xff]
      %s205 = scalar_lea.vmem %s1, 32
      %v206 = vld [vmem:[%s205] sm:$0xff]
      %s207 = scalar_lea.vmem %s1, 40
      %v208 = vld [vmem:[%s207] sm:$0xff]
      %s209 = scalar_lea.vmem %s1, 48
      %v210 = vld [vmem:[%s209] sm:$0xff]
      %s211 = scalar_lea.vmem %s1, 56
      %v212 = vld [vmem:[%s211] sm:$0xff]
      %s213 = scalar_lea.vmem %s1, 64
      %v214 = vld [vmem:[%s213] sm:$0xff]
      %v215 = vld [vmem:[%s3] ss:$8 sm:$0x3]
      %s216 = scalar_lea.vmem %s3, 1
      %v217 = vld [vmem:[%s216] ss:$8 sm:$0x3]
      %s218 = scalar_lea.vmem %s3, 2
      %v219 = vld [vmem:[%s218] ss:$8 sm:$0x3]
      %s220 = scalar_lea.vmem %s3, 3
      %v221 = vld [vmem:[%s220] ss:$8 sm:$0x3]
      %s222 = scalar_lea.vmem %s3, 4
      %v223 = vld [vmem:[%s222] ss:$8 sm:$0x3]
      %s224 = scalar_lea.vmem %s3, 5
      %v225 = vld [vmem:[%s224] ss:$8 sm:$0x3]
      %s226 = scalar_lea.vmem %s3, 6
      %v227 = vld [vmem:[%s226] ss:$8 sm:$0x3]
      %s228 = scalar_lea.vmem %s3, 7
      %v229 = vld [vmem:[%s228] ss:$8 sm:$0x3]
      %s230 = scalar_lea.vmem %s3, 16
      %v231 = vld [vmem:[%s230] ss:$8 sm:$0x3]
      %v232 = vld [vmem:[%s2] sm:$0xff]
      %v233 = vld [vmem:[%s192] sm:$0xff]
      %v234 = vld [vmem:[%s192 + $0x8] sm:$0xff]
      %235 = vrot.lane.b32.xlu0 %v233, 17
      %v236 = vpop.permute.xlu0 %235
      %237 = vrot.lane.b32.xlu0 %v234, 17
      %v238 = vpop.permute.xlu0 %237
      %v239 = vlaneseq
      %v240 = vand.u32 %v239, 127
      %vm241 = vcmp.lt.s32.totalorder %v240, 17
      %v242 = vsel %vm241, %v236, %v238
      %v243 = vsel %vm241, %v238, %v236
      %v245 = vperm.slane %v215, 0
      %v246 = vperm.slane %v215, 1
      %v249 = vmul.f32 %v243, %v245
      %v250 = vmul.f32 %v242, %v246
      %251 = vrot.lane.b32.xlu0 %v233, 16
      %v252 = vpop.permute.xlu0 %251
      %253 = vrot.lane.b32.xlu0 %v234, 16
      %v254 = vpop.permute.xlu0 %253
      %vm255 = vcmp.lt.s32.totalorder %v240, 16
      %v256 = vsel %vm255, %v252, %v254
      %v257 = vsel %vm255, %v254, %v252
      %v259 = vperm.slane %v217, 0
      %v260 = vperm.slane %v217, 1
      %v263 = vmul.f32 %v257, %v259
      %v264 = vmul.f32 %v256, %v260
      %vm265 = vcmask 64512
      %v267 = vsel %vm265, %v200, 0
      %269 = vmatpush.msra.mxu0 0.0
      %270 = vmatpush.msra.mxu0 0.0
      %271 = vmatpush.msra.mxu0 0.0
      %272 = vmatpush.msra.mxu0 0.0
      %273 = vmatpush.msra.mxu0 0.0
      %274 = vmatpush.msra.mxu0 0.0
      %275 = vmatpush.msra.mxu0 0.0
      %276 = vmatpush.msra.mxu0 0.0
      %277 = vmatpush.msra.mxu0 0.0
      %278 = vmatpush.msra.mxu0 0.0
      %279 = vmatpush.msra.mxu0 0.0
      %280 = vmatpush.msra.mxu0 0.0
      %281 = vmatpush.msra.mxu0 0.0
      %282 = vmatpush.msra.mxu0 0.0
      %283 = vmatpush.msra.mxu0 0.0
      %284 = vmatpush.msra.mxu0 %v263
      %285 = vmatmul.f32.gmra.mxu0 %v267
      %v286 = vpop.f32.mrf.mxu0
      %v287 = vadd.f32 0.0, %v286
      %288 = vdwg.mxu0
      %289 = vmatpush.msra.mxu0 0.0
      %290 = vmatpush.msra.mxu0 0.0
      %291 = vmatpush.msra.mxu0 0.0
      %292 = vmatpush.msra.mxu0 0.0
      %293 = vmatpush.msra.mxu0 0.0
      %294 = vmatpush.msra.mxu0 0.0
      %295 = vmatpush.msra.mxu0 0.0
      %296 = vmatpush.msra.mxu0 0.0
      %297 = vmatpush.msra.mxu0 0.0
      %298 = vmatpush.msra.mxu0 0.0
      %299 = vmatpush.msra.mxu0 0.0
      %300 = vmatpush.msra.mxu0 0.0
      %301 = vmatpush.msra.mxu0 0.0
      %302 = vmatpush.msra.mxu0 0.0
      %303 = vmatpush.msra.mxu0 0.0
      %304 = vmatpush.msra.mxu0 %v264
      %305 = vmatmul.f32.gmra.mxu0 %v267
      %v306 = vpop.f32.mrf.mxu0
      %v307 = vadd.f32 0.0, %v306
      %308 = vdwg.mxu0
      %v310 = vsel %vm265, %v198, 0
      %312 = vmatpush.msra.mxu0 0.0
      %313 = vmatpush.msra.mxu0 0.0
      %314 = vmatpush.msra.mxu0 0.0
      %315 = vmatpush.msra.mxu0 0.0
      %316 = vmatpush.msra.mxu0 0.0
      %317 = vmatpush.msra.mxu0 0.0
      %318 = vmatpush.msra.mxu0 0.0
      %319 = vmatpush.msra.mxu0 0.0
      %320 = vmatpush.msra.mxu0 0.0
      %321 = vmatpush.msra.mxu0 0.0
      %322 = vmatpush.msra.mxu0 0.0
      %323 = vmatpush.msra.mxu0 0.0
      %324 = vmatpush.msra.mxu0 0.0
      %325 = vmatpush.msra.mxu0 0.0
      %326 = vmatpush.msra.mxu0 0.0
      %327 = vmatpush.msra.mxu0 %v249
      %328 = vmatmul.f32.gmra.mxu0 %v310
      %v329 = vpop.f32.mrf.mxu0
      %v330 = vadd.f32 %v287, %v329
      %331 = vdwg.mxu0
      %332 = vmatpush.msra.mxu0 0.0
      %333 = vmatpush.msra.mxu0 0.0
      %334 = vmatpush.msra.mxu0 0.0
      %335 = vmatpush.msra.mxu0 0.0
      %336 = vmatpush.msra.mxu0 0.0
      %337 = vmatpush.msra.mxu0 0.0
      %338 = vmatpush.msra.mxu0 0.0
      %339 = vmatpush.msra.mxu0 0.0
      %340 = vmatpush.msra.mxu0 0.0
      %341 = vmatpush.msra.mxu0 0.0
      %342 = vmatpush.msra.mxu0 0.0
      %343 = vmatpush.msra.mxu0 0.0
      %344 = vmatpush.msra.mxu0 0.0
      %345 = vmatpush.msra.mxu0 0.0
      %346 = vmatpush.msra.mxu0 0.0
      %347 = vmatpush.msra.mxu0 %v250
      %348 = vmatmul.f32.gmra.mxu0 %v310
      %v349 = vpop.f32.mrf.mxu0
      %v350 = vadd.f32 %v307, %v349
      %351 = vdwg.mxu0
      %352 = vrot.lane.b32.xlu0 %v233, 15
      %v353 = vpop.permute.xlu0 %352
      %354 = vrot.lane.b32.xlu0 %v234, 15
      %v355 = vpop.permute.xlu0 %354
      %vm356 = vcmp.lt.s32.totalorder %v240, 15
      %v357 = vsel %vm356, %v353, %v355
      %v358 = vsel %vm356, %v355, %v353
      %v360 = vperm.slane %v219, 0
      %v361 = vperm.slane %v219, 1
      %v364 = vmul.f32 %v358, %v360
      %v365 = vmul.f32 %v357, %v361
      %v367 = vsel %vm265, %v202, 0
      %369 = vmatpush.msra.mxu0 0.0
      %370 = vmatpush.msra.mxu0 0.0
      %371 = vmatpush.msra.mxu0 0.0
      %372 = vmatpush.msra.mxu0 0.0
      %373 = vmatpush.msra.mxu0 0.0
      %374 = vmatpush.msra.mxu0 0.0
      %375 = vmatpush.msra.mxu0 0.0
      %376 = vmatpush.msra.mxu0 0.0
      %377 = vmatpush.msra.mxu0 0.0
      %378 = vmatpush.msra.mxu0 0.0
      %379 = vmatpush.msra.mxu0 0.0
      %380 = vmatpush.msra.mxu0 0.0
      %381 = vmatpush.msra.mxu0 0.0
      %382 = vmatpush.msra.mxu0 0.0
      %383 = vmatpush.msra.mxu0 0.0
      %384 = vmatpush.msra.mxu0 %v364
      %385 = vmatmul.f32.gmra.mxu0 %v367
      %v386 = vpop.f32.mrf.mxu0
      %v387 = vadd.f32 0.0, %v386
      %388 = vdwg.mxu0
      %389 = vmatpush.msra.mxu0 0.0
      %390 = vmatpush.msra.mxu0 0.0
      %391 = vmatpush.msra.mxu0 0.0
      %392 = vmatpush.msra.mxu0 0.0
      %393 = vmatpush.msra.mxu0 0.0
      %394 = vmatpush.msra.mxu0 0.0
      %395 = vmatpush.msra.mxu0 0.0
      %396 = vmatpush.msra.mxu0 0.0
      %397 = vmatpush.msra.mxu0 0.0
      %398 = vmatpush.msra.mxu0 0.0
      %399 = vmatpush.msra.mxu0 0.0
      %400 = vmatpush.msra.mxu0 0.0
      %401 = vmatpush.msra.mxu0 0.0
      %402 = vmatpush.msra.mxu0 0.0
      %403 = vmatpush.msra.mxu0 0.0
      %404 = vmatpush.msra.mxu0 %v365
      %405 = vmatmul.f32.gmra.mxu0 %v367
      %v406 = vpop.f32.mrf.mxu0
      %v407 = vadd.f32 0.0, %v406
      %408 = vdwg.mxu0
      %v409 = vadd.f32 %v330, %v387
      %v410 = vadd.f32 %v350, %v407
      %411 = vrot.lane.b32.xlu0 %v233, 1
      %v412 = vpop.permute.xlu0 %411
      %413 = vrot.lane.b32.xlu0 %v234, 1
      %v414 = vpop.permute.xlu0 %413
      %vm415 = vcmp.lt.s32.totalorder %v240, 1
      %v416 = vsel %vm415, %v412, %v414
      %v417 = vsel %vm415, %v414, %v412
      %v419 = vperm.slane %v221, 0
      %v420 = vperm.slane %v221, 1
      %v423 = vmul.f32 %v417, %v419
      %v424 = vmul.f32 %v416, %v420
      %v426 = vsel %vm265, %v204, 0
      %428 = vmatpush.msra.mxu0 0.0
      %429 = vmatpush.msra.mxu0 0.0
      %430 = vmatpush.msra.mxu0 0.0
      %431 = vmatpush.msra.mxu0 0.0
      %432 = vmatpush.msra.mxu0 0.0
      %433 = vmatpush.msra.mxu0 0.0
      %434 = vmatpush.msra.mxu0 0.0
      %435 = vmatpush.msra.mxu0 0.0
      %436 = vmatpush.msra.mxu0 0.0
      %437 = vmatpush.msra.mxu0 0.0
      %438 = vmatpush.msra.mxu0 0.0
      %439 = vmatpush.msra.mxu0 0.0
      %440 = vmatpush.msra.mxu0 0.0
      %441 = vmatpush.msra.mxu0 0.0
      %442 = vmatpush.msra.mxu0 0.0
      %443 = vmatpush.msra.mxu0 %v423
      %444 = vmatmul.f32.gmra.mxu0 %v426
      %v445 = vpop.f32.mrf.mxu0
      %v446 = vadd.f32 0.0, %v445
      %447 = vdwg.mxu0
      %448 = vmatpush.msra.mxu0 0.0
      %449 = vmatpush.msra.mxu0 0.0
      %450 = vmatpush.msra.mxu0 0.0
      %451 = vmatpush.msra.mxu0 0.0
      %452 = vmatpush.msra.mxu0 0.0
      %453 = vmatpush.msra.mxu0 0.0
      %454 = vmatpush.msra.mxu0 0.0
      %455 = vmatpush.msra.mxu0 0.0
      %456 = vmatpush.msra.mxu0 0.0
      %457 = vmatpush.msra.mxu0 0.0
      %458 = vmatpush.msra.mxu0 0.0
      %459 = vmatpush.msra.mxu0 0.0
      %460 = vmatpush.msra.mxu0 0.0
      %461 = vmatpush.msra.mxu0 0.0
      %462 = vmatpush.msra.mxu0 0.0
      %463 = vmatpush.msra.mxu0 %v424
      %464 = vmatmul.f32.gmra.mxu0 %v426
      %v465 = vpop.f32.mrf.mxu0
      %v466 = vadd.f32 0.0, %v465
      %467 = vdwg.mxu0
      %v468 = vadd.f32 %v409, %v446
      %v469 = vadd.f32 %v410, %v466
      %v471 = vperm.slane %v223, 0
      %v472 = vperm.slane %v223, 1
      %v475 = vmul.f32 %v233, %v471
      %v476 = vmul.f32 %v234, %v472
      %v478 = vsel %vm265, %v206, 0
      %480 = vmatpush.msra.mxu0 0.0
      %481 = vmatpush.msra.mxu0 0.0
      %482 = vmatpush.msra.mxu0 0.0
      %483 = vmatpush.msra.mxu0 0.0
      %484 = vmatpush.msra.mxu0 0.0
      %485 = vmatpush.msra.mxu0 0.0
      %486 = vmatpush.msra.mxu0 0.0
      %487 = vmatpush.msra.mxu0 0.0
      %488 = vmatpush.msra.mxu0 0.0
      %489 = vmatpush.msra.mxu0 0.0
      %490 = vmatpush.msra.mxu0 0.0
      %491 = vmatpush.msra.mxu0 0.0
      %492 = vmatpush.msra.mxu0 0.0
      %493 = vmatpush.msra.mxu0 0.0
      %494 = vmatpush.msra.mxu0 0.0
      %495 = vmatpush.msra.mxu0 %v475
      %496 = vmatmul.f32.gmra.mxu0 %v478
      %v497 = vpop.f32.mrf.mxu0
      %v498 = vadd.f32 0.0, %v497
      %499 = vdwg.mxu0
      %500 = vmatpush.msra.mxu0 0.0
      %501 = vmatpush.msra.mxu0 0.0
      %502 = vmatpush.msra.mxu0 0.0
      %503 = vmatpush.msra.mxu0 0.0
      %504 = vmatpush.msra.mxu0 0.0
      %505 = vmatpush.msra.mxu0 0.0
      %506 = vmatpush.msra.mxu0 0.0
      %507 = vmatpush.msra.mxu0 0.0
      %508 = vmatpush.msra.mxu0 0.0
      %509 = vmatpush.msra.mxu0 0.0
      %510 = vmatpush.msra.mxu0 0.0
      %511 = vmatpush.msra.mxu0 0.0
      %512 = vmatpush.msra.mxu0 0.0
      %513 = vmatpush.msra.mxu0 0.0
      %514 = vmatpush.msra.mxu0 0.0
      %515 = vmatpush.msra.mxu0 %v476
      %516 = vmatmul.f32.gmra.mxu0 %v478
      %v517 = vpop.f32.mrf.mxu0
      %v518 = vadd.f32 0.0, %v517
      %519 = vdwg.mxu0
      %v520 = vadd.f32 %v468, %v498
      %v521 = vadd.f32 %v469, %v518
      %522 = vrot.lane.b32.xlu0 %v233, 127
      %v523 = vpop.permute.xlu0 %522
      %524 = vrot.lane.b32.xlu0 %v234, 127
      %v525 = vpop.permute.xlu0 %524
      %vm526 = vcmp.lt.s32.totalorder %v240, 127
      %v527 = vsel %vm526, %v523, %v525
      %v528 = vsel %vm526, %v525, %v523
      %v530 = vperm.slane %v225, 0
      %v531 = vperm.slane %v225, 1
      %v534 = vmul.f32 %v527, %v530
      %v535 = vmul.f32 %v528, %v531
      %v537 = vsel %vm265, %v208, 0
      %539 = vmatpush.msra.mxu0 0.0
      %540 = vmatpush.msra.mxu0 0.0
      %541 = vmatpush.msra.mxu0 0.0
      %542 = vmatpush.msra.mxu0 0.0
      %543 = vmatpush.msra.mxu0 0.0
      %544 = vmatpush.msra.mxu0 0.0
      %545 = vmatpush.msra.mxu0 0.0
      %546 = vmatpush.msra.mxu0 0.0
      %547 = vmatpush.msra.mxu0 0.0
      %548 = vmatpush.msra.mxu0 0.0
      %549 = vmatpush.msra.mxu0 0.0
      %550 = vmatpush.msra.mxu0 0.0
      %551 = vmatpush.msra.mxu0 0.0
      %552 = vmatpush.msra.mxu0 0.0
      %553 = vmatpush.msra.mxu0 0.0
      %554 = vmatpush.msra.mxu0 %v534
      %555 = vmatmul.f32.gmra.mxu0 %v537
      %v556 = vpop.f32.mrf.mxu0
      %v557 = vadd.f32 0.0, %v556
      %558 = vdwg.mxu0
      %559 = vmatpush.msra.mxu0 0.0
      %560 = vmatpush.msra.mxu0 0.0
      %561 = vmatpush.msra.mxu0 0.0
      %562 = vmatpush.msra.mxu0 0.0
      %563 = vmatpush.msra.mxu0 0.0
      %564 = vmatpush.msra.mxu0 0.0
      %565 = vmatpush.msra.mxu0 0.0
      %566 = vmatpush.msra.mxu0 0.0
      %567 = vmatpush.msra.mxu0 0.0
      %568 = vmatpush.msra.mxu0 0.0
      %569 = vmatpush.msra.mxu0 0.0
      %570 = vmatpush.msra.mxu0 0.0
      %571 = vmatpush.msra.mxu0 0.0
      %572 = vmatpush.msra.mxu0 0.0
      %573 = vmatpush.msra.mxu0 0.0
      %574 = vmatpush.msra.mxu0 %v535
      %575 = vmatmul.f32.gmra.mxu0 %v537
      %v576 = vpop.f32.mrf.mxu0
      %v577 = vadd.f32 0.0, %v576
      %578 = vdwg.mxu0
      %v579 = vadd.f32 %v520, %v557
      %v580 = vadd.f32 %v521, %v577
      %581 = vrot.lane.b32.xlu0 %v233, 113
      %v582 = vpop.permute.xlu0 %581
      %583 = vrot.lane.b32.xlu0 %v234, 113
      %v584 = vpop.permute.xlu0 %583
      %vm585 = vcmp.lt.s32.totalorder %v240, 113
      %v586 = vsel %vm585, %v582, %v584
      %v587 = vsel %vm585, %v584, %v582
      %v589 = vperm.slane %v227, 0
      %v590 = vperm.slane %v227, 1
      %v593 = vmul.f32 %v586, %v589
      %v594 = vmul.f32 %v587, %v590
      %v596 = vsel %vm265, %v210, 0
      %598 = vmatpush.msra.mxu0 0.0
      %599 = vmatpush.msra.mxu0 0.0
      %600 = vmatpush.msra.mxu0 0.0
      %601 = vmatpush.msra.mxu0 0.0
      %602 = vmatpush.msra.mxu0 0.0
      %603 = vmatpush.msra.mxu0 0.0
      %604 = vmatpush.msra.mxu0 0.0
      %605 = vmatpush.msra.mxu0 0.0
      %606 = vmatpush.msra.mxu0 0.0
      %607 = vmatpush.msra.mxu0 0.0
      %608 = vmatpush.msra.mxu0 0.0
      %609 = vmatpush.msra.mxu0 0.0
      %610 = vmatpush.msra.mxu0 0.0
      %611 = vmatpush.msra.mxu0 0.0
      %612 = vmatpush.msra.mxu0 0.0
      %613 = vmatpush.msra.mxu0 %v593
      %614 = vmatmul.f32.gmra.mxu0 %v596
      %v615 = vpop.f32.mrf.mxu0
      %v616 = vadd.f32 0.0, %v615
      %617 = vdwg.mxu0
      %618 = vmatpush.msra.mxu0 0.0
      %619 = vmatpush.msra.mxu0 0.0
      %620 = vmatpush.msra.mxu0 0.0
      %621 = vmatpush.msra.mxu0 0.0
      %622 = vmatpush.msra.mxu0 0.0
      %623 = vmatpush.msra.mxu0 0.0
      %624 = vmatpush.msra.mxu0 0.0
      %625 = vmatpush.msra.mxu0 0.0
      %626 = vmatpush.msra.mxu0 0.0
      %627 = vmatpush.msra.mxu0 0.0
      %628 = vmatpush.msra.mxu0 0.0
      %629 = vmatpush.msra.mxu0 0.0
      %630 = vmatpush.msra.mxu0 0.0
      %631 = vmatpush.msra.mxu0 0.0
      %632 = vmatpush.msra.mxu0 0.0
      %633 = vmatpush.msra.mxu0 %v594
      %634 = vmatmul.f32.gmra.mxu0 %v596
      %v635 = vpop.f32.mrf.mxu0
      %v636 = vadd.f32 0.0, %v635
      %637 = vdwg.mxu0
      %v638 = vadd.f32 %v579, %v616
      %v639 = vadd.f32 %v580, %v636
      %640 = vrot.lane.b32.xlu0 %v233, 112
      %v641 = vpop.permute.xlu0 %640
      %642 = vrot.lane.b32.xlu0 %v234, 112
      %v643 = vpop.permute.xlu0 %642
      %vm644 = vcmp.lt.s32.totalorder %v240, 112
      %v645 = vsel %vm644, %v641, %v643
      %v646 = vsel %vm644, %v643, %v641
      %v648 = vperm.slane %v229, 0
      %v649 = vperm.slane %v229, 1
      %v652 = vmul.f32 %v645, %v648
      %v653 = vmul.f32 %v646, %v649
      %v655 = vsel %vm265, %v212, 0
      %657 = vmatpush.msra.mxu0 0.0
      %658 = vmatpush.msra.mxu0 0.0
      %659 = vmatpush.msra.mxu0 0.0
      %660 = vmatpush.msra.mxu0 0.0
      %661 = vmatpush.msra.mxu0 0.0
      %662 = vmatpush.msra.mxu0 0.0
      %663 = vmatpush.msra.mxu0 0.0
      %664 = vmatpush.msra.mxu0 0.0
      %665 = vmatpush.msra.mxu0 0.0
      %666 = vmatpush.msra.mxu0 0.0
      %667 = vmatpush.msra.mxu0 0.0
      %668 = vmatpush.msra.mxu0 0.0
      %669 = vmatpush.msra.mxu0 0.0
      %670 = vmatpush.msra.mxu0 0.0
      %671 = vmatpush.msra.mxu0 0.0
      %672 = vmatpush.msra.mxu0 %v652
      %673 = vmatmul.f32.gmra.mxu0 %v655
      %v674 = vpop.f32.mrf.mxu0
      %v675 = vadd.f32 0.0, %v674
      %676 = vdwg.mxu0
      %677 = vmatpush.msra.mxu0 0.0
      %678 = vmatpush.msra.mxu0 0.0
      %679 = vmatpush.msra.mxu0 0.0
      %680 = vmatpush.msra.mxu0 0.0
      %681 = vmatpush.msra.mxu0 0.0
      %682 = vmatpush.msra.mxu0 0.0
      %683 = vmatpush.msra.mxu0 0.0
      %684 = vmatpush.msra.mxu0 0.0
      %685 = vmatpush.msra.mxu0 0.0
      %686 = vmatpush.msra.mxu0 0.0
      %687 = vmatpush.msra.mxu0 0.0
      %688 = vmatpush.msra.mxu0 0.0
      %689 = vmatpush.msra.mxu0 0.0
      %690 = vmatpush.msra.mxu0 0.0
      %691 = vmatpush.msra.mxu0 0.0
      %692 = vmatpush.msra.mxu0 %v653
      %693 = vmatmul.f32.gmra.mxu0 %v655
      %v694 = vpop.f32.mrf.mxu0
      %v695 = vadd.f32 0.0, %v694
      %696 = vdwg.mxu0
      %v697 = vadd.f32 %v638, %v675
      %v698 = vadd.f32 %v639, %v695
      %699 = vrot.lane.b32.xlu0 %v233, 111
      %v700 = vpop.permute.xlu0 %699
      %701 = vrot.lane.b32.xlu0 %v234, 111
      %v702 = vpop.permute.xlu0 %701
      %vm703 = vcmp.lt.s32.totalorder %v240, 111
      %v704 = vsel %vm703, %v700, %v702
      %v705 = vsel %vm703, %v702, %v700
      %v707 = vperm.slane %v231, 0
      %v708 = vperm.slane %v231, 1
      %v711 = vmul.f32 %v704, %v707
      %v712 = vmul.f32 %v705, %v708
      %v714 = vsel %vm265, %v214, 0
      %716 = vmatpush.msra.mxu0 0.0
      %717 = vmatpush.msra.mxu0 0.0
      %718 = vmatpush.msra.mxu0 0.0
      %719 = vmatpush.msra.mxu0 0.0
      %720 = vmatpush.msra.mxu0 0.0
      %721 = vmatpush.msra.mxu0 0.0
      %722 = vmatpush.msra.mxu0 0.0
      %723 = vmatpush.msra.mxu0 0.0
      %724 = vmatpush.msra.mxu0 0.0
      %725 = vmatpush.msra.mxu0 0.0
      %726 = vmatpush.msra.mxu0 0.0
      %727 = vmatpush.msra.mxu0 0.0
      %728 = vmatpush.msra.mxu0 0.0
      %729 = vmatpush.msra.mxu0 0.0
      %730 = vmatpush.msra.mxu0 0.0
      %731 = vmatpush.msra.mxu0 %v711
      %732 = vmatmul.f32.gmra.mxu0 %v714
      %v733 = vpop.f32.mrf.mxu0
      %v734 = vadd.f32 0.0, %v733
      %735 = vdwg.mxu0
      %736 = vmatpush.msra.mxu0 0.0
      %737 = vmatpush.msra.mxu0 0.0
      %738 = vmatpush.msra.mxu0 0.0
      %739 = vmatpush.msra.mxu0 0.0
      %740 = vmatpush.msra.mxu0 0.0
      %741 = vmatpush.msra.mxu0 0.0
      %742 = vmatpush.msra.mxu0 0.0
      %743 = vmatpush.msra.mxu0 0.0
      %744 = vmatpush.msra.mxu0 0.0
      %745 = vmatpush.msra.mxu0 0.0
      %746 = vmatpush.msra.mxu0 0.0
      %747 = vmatpush.msra.mxu0 0.0
      %748 = vmatpush.msra.mxu0 0.0
      %749 = vmatpush.msra.mxu0 0.0
      %750 = vmatpush.msra.mxu0 0.0
      %751 = vmatpush.msra.mxu0 %v712
      %752 = vmatmul.f32.gmra.mxu0 %v714
      %v753 = vpop.f32.mrf.mxu0
      %v754 = vadd.f32 0.0, %v753
      %755 = vdwg.mxu0
      %v756 = vadd.f32 %v697, %v734
      %v757 = vadd.f32 %v698, %v754
      %759 = vset.pattern.permute.xlu0 0
      %760 = vperm.xlu0 %759, %v232
      %v761 = vpop.permute.xlu0 %760
      %v763 = vadd.f32 %v756, %v761
      %v764 = vadd.f32 %v757, %v761
      %v765 = vmax.f32 %v763, 0.0
      %v766 = vmax.f32 %v764, 0.0
      %767 = vst [vmem:[%s197] sm:$0xff] %v765
      %768 = vst [vmem:[%s197 + $0x8] sm:$0xff] %v766
      %p769 = scmp.lt.s32.totalorder %s15, 1
      %s770 = scalar_select %p769, %s15, 1
      %s771 = smul.addr %s770, 2
      %s772 = smul.addr %s771, 8
      %s773 = scalar_lea.vmem %s4, %s772
      // Predicated region
      $region37: #{torch_compile_forward.1} parent=35 // pred_check
        %p774 = pneg %p122
      $region38: #{torch_compile_forward.1} parent=35 // pred_check_branch
        %776 = sbr.rel (%p774) target = $region40
      $region39: #{torch_compile_forward.1} parent=35 // pred_region
        _
      $region40: #{torch_compile_forward.1} parent=35 // pred_fallthru
        _
    $region36: #{torch_compile_forward.1} parent=5 // pred_fallthru
      _
    %p777 = scmp.le.s32.totalorder 2, %s10
    // Predicated region
    $region41: #{torch_compile_forward.1} parent=5 // pred_check
      %p778 = pneg %p777
    $region42: #{torch_compile_forward.1} parent=5 // pred_check_branch
      %780 = sbr.rel (%p778) target = $region44
    $region43: #{torch_compile_forward.1} parent=5 // pred_region
      %s781 = ssub.s32 %s10, 2
      // Predicated region
      $region45: #{torch_compile_forward.1} parent=43 // pred_check
        %p782 = pneg %p128
      $region46: #{torch_compile_forward.1} parent=43 // pred_check_branch
        %784 = sbr.rel (%p782) target = $region48
      $region47: #{torch_compile_forward.1} parent=43 // pred_region
        %p785 = scmp.lt.s32.totalorder %s16, 1
        %s786 = scalar_select %p785, %s16, 1
        %s787 = smul.addr %s786, 2
        %s788 = smul.addr %s787, 8
        %s789 = scalar_lea.vmem %s4, %s788
      $region48: #{torch_compile_forward.1} parent=43 // pred_fallthru
        _
    $region44: #{torch_compile_forward.1} parent=5 // pred_fallthru
      _
  $region6: #{torch_compile_forward.1} parent=0 // loop_footer
    %s14 = sadd.s32 1, %s10
  $region7: #{torch_compile_forward.1} parent=0 // loop_footer_branch
    %9 = sbr.rel target = $region3
  $region8: #{torch_compile_forward.1} parent=0 // loop_exit
    _

</llo_original>
